<compile_context>
chip_gen: v5e
topology: v5e:2x2
jax: 0.10.0
libtpu: 0.0.40
codegen_flags: <defaults>
</compile_context>

<pallas_src>
import functools

import jax
import jax.numpy as jnp
from jax.experimental import pallas as pl
from jax.experimental.pallas import tpu as pltpu


BLOCK_M = 128          # output-row tile (MXU M dim, multiple of 8 sublanes)
LANE = 128             # lane width: OC / K padded to multiples of this


def _round_up(v, m):
    return (v + m - 1) // m * m


def _conv_stats_kernel(p_ref, w_ref, b_ref, y_ref, stats_ref, *, block_m, n_rows):
    """One row-block of the im2col matmul + per-channel partial BN stats.

    p_ref    : [BLOCK_M, K_pad]   bf16 im2col patches
    w_ref    : [K_pad, OC_pad]    bf16 weights (same block every iteration)
    b_ref    : [1, OC_pad]        f32 conv bias
    y_ref    : [BLOCK_M, OC_pad]  f32 conv output (pre-BN)
    stats_ref: [8, OC_pad]        f32 row0 = sum, row1 = sum of squares
    """
    y = jnp.dot(p_ref[...], w_ref[...], preferred_element_type=jnp.float32)
    y = y + b_ref[...]                                     # [BLOCK_M, OC_pad]
    y_ref[...] = y

    # Mask rows past the real row count so padded rows don't pollute BN stats.
    row0 = pl.program_id(0) * block_m
    rid = row0 + jax.lax.broadcasted_iota(jnp.int32, (block_m, 1), 0)
    ym = jnp.where(rid < n_rows, y, 0.0)

    ssum = jnp.sum(ym, axis=0, keepdims=True)              # [1, OC_pad]
    ssq = jnp.sum(ym * ym, axis=0, keepdims=True)          # [1, OC_pad]
    stats_ref[...] = jnp.concatenate(
        [ssum, ssq, jnp.zeros((6, ym.shape[1]), jnp.float32)], axis=0)


def _bn_apply_kernel(y_ref, scale_ref, shift_ref, o_ref):
    """y * scale + shift (per-channel), one row block per grid step."""
    o_ref[...] = y_ref[...] * scale_ref[...] + shift_ref[...]


@functools.partial(jax.jit, static_argnames=("stride", "padding", "dilation", "eps"))
def conv2d_bn_forward(x_nchw, weight, bias, gamma, beta, *,
                      stride=1, padding=1, dilation=1, eps=1e-5):
    """x_nchw: [N, C, H, W], weight: [OC, C, KH, KW] -> [N, OC, OH, OW]."""
    n, c, h, w = x_nchw.shape
    oc, _, kh, kw = weight.shape
    out_h = (h + 2 * padding - dilation * (kh - 1) - 1) // stride + 1
    out_w = (w + 2 * padding - dilation * (kw - 1) - 1) // stride + 1

    rows = n * out_h * out_w
    k_dim = kh * kw * c
    rows_pad = _round_up(max(rows, BLOCK_M), BLOCK_M)
    k_pad = _round_up(k_dim, LANE)
    oc_pad = _round_up(oc, LANE)
    grid_m = rows_pad // BLOCK_M

    # ---- glue (XLA): NCHW -> NHWC, spatial pad, im2col, lane/row padding ----
    x_nhwc = jnp.transpose(x_nchw, (0, 2, 3, 1))
    x_sp = jnp.pad(x_nhwc, ((0, 0), (padding, padding), (padding, padding), (0, 0)))
    taps = []
    for ih in range(kh):
        for iw in range(kw):
            h0 = ih * dilation
            w0 = iw * dilation
            taps.append(jax.lax.slice(
                x_sp,
                (0, h0, w0, 0),
                (n, h0 + (out_h - 1) * stride + 1, w0 + (out_w - 1) * stride + 1, c),
                strides=(1, stride, stride, 1)))            # [N, OH, OW, C]
    patches = jnp.concatenate(taps, axis=-1).reshape(rows, k_dim)
    patches = jnp.pad(patches, ((0, rows_pad - rows), (0, k_pad - k_dim)))
    patches = patches.astype(jnp.bfloat16)

    # weight [OC, C, KH, KW] -> [KH, KW, C, OC] -> [K, OC], padded, bf16.
    w2d = jnp.transpose(weight, (2, 3, 1, 0)).reshape(k_dim, oc)
    w2d = jnp.pad(w2d, ((0, k_pad - k_dim), (0, oc_pad - oc))).astype(jnp.bfloat16)
    b2 = jnp.pad(bias.astype(jnp.float32), (0, oc_pad - oc)).reshape(1, oc_pad)
    g_pad = jnp.pad(gamma.astype(jnp.float32), (0, oc_pad - oc))
    bt_pad = jnp.pad(beta.astype(jnp.float32), (0, oc_pad - oc))

    cparams = pltpu.CompilerParams(
        dimension_semantics=("parallel",),
        vmem_limit_bytes=32 * 1024 * 1024,
    )

    # ---- pass 1: conv (one wide matmul per row block) + partial BN stats ----
    cost = pl.CostEstimate(
        flops=2 * rows_pad * k_pad * oc_pad,
        transcendentals=0,
        bytes_accessed=(rows_pad * k_pad * 2 + k_pad * oc_pad * 2
                        + rows_pad * oc_pad * 4 + grid_m * 8 * oc_pad * 4),
    )
    conv_kernel = functools.partial(_conv_stats_kernel,
                                    block_m=BLOCK_M, n_rows=rows)
    y2d, stats = pl.pallas_call(
        conv_kernel,
        out_shape=(jax.ShapeDtypeStruct((rows_pad, oc_pad), jnp.float32),
                   jax.ShapeDtypeStruct((grid_m * 8, oc_pad), jnp.float32)),
        grid=(grid_m,),
        in_specs=[pl.BlockSpec((BLOCK_M, k_pad), lambda i: (i, 0)),
                  pl.BlockSpec((k_pad, oc_pad), lambda i: (0, 0)),
                  pl.BlockSpec((1, oc_pad), lambda i: (0, 0))],
        out_specs=(pl.BlockSpec((BLOCK_M, oc_pad), lambda i: (i, 0)),
                   pl.BlockSpec((8, oc_pad), lambda i: (i, 0))),
        compiler_params=cparams,
        cost_estimate=cost,
    )(patches, w2d, b2)

    # ---- tiny per-channel combine (O(grid_m * OC) scalar work, plain JAX) ----
    stats3 = stats.reshape(grid_m, 8, oc_pad)
    tot_sum = jnp.sum(stats3[:, 0, :], axis=0)
    tot_sq = jnp.sum(stats3[:, 1, :], axis=0)
    mean = tot_sum / rows
    var = jnp.maximum(tot_sq / rows - mean * mean, 0.0)
    inv_std = jax.lax.rsqrt(var + eps)
    scale = (g_pad * inv_std).reshape(1, oc_pad)
    shift = (bt_pad - mean * g_pad * inv_std).reshape(1, oc_pad)

    # ---- pass 2: normalize (lane-dense, parallel row blocks) ----
    out2d = pl.pallas_call(
        _bn_apply_kernel,
        out_shape=jax.ShapeDtypeStruct((rows_pad, oc_pad), jnp.float32),
        grid=(grid_m,),
        in_specs=[pl.BlockSpec((BLOCK_M, oc_pad), lambda i: (i, 0)),
                  pl.BlockSpec((1, oc_pad), lambda i: (0, 0)),
                  pl.BlockSpec((1, oc_pad), lambda i: (0, 0))],
        out_specs=pl.BlockSpec((BLOCK_M, oc_pad), lambda i: (i, 0)),
        compiler_params=cparams,
    )(y2d, scale, shift)

    # Slice away row / lane padding, back to PyTorch NCHW.
    out = out2d[:rows, :oc].reshape(n, out_h, out_w, oc)
    return jnp.transpose(out, (0, 3, 1, 2))


def _reference(x_nchw, weight, bias, gamma, beta, *, stride, padding, dilation, eps):
    """Plain-JAX reference: conv2d + bias + training-mode BatchNorm2d."""
    y = jax.lax.conv_general_dilated(
        x_nchw.astype(jnp.float32), weight.astype(jnp.float32),
        window_strides=(stride, stride),
        padding=[(padding, padding), (padding, padding)],
        rhs_dilation=(dilation, dilation),
        dimension_numbers=("NCHW", "OIHW", "NCHW"),
    ) + bias.reshape(1, -1, 1, 1)
    mean = jnp.mean(y, axis=(0, 2, 3), keepdims=True)
    var = jnp.mean((y - mean) ** 2, axis=(0, 2, 3), keepdims=True)
    yhat = (y - mean) * jax.lax.rsqrt(var + eps)
    return yhat * gamma.reshape(1, -1, 1, 1) + beta.reshape(1, -1, 1, 1)


if __name__ == "__main__":
    # conv2DBN(inc=4, outc=8, k_size=3, stride=1, padding=1, bias=True, dilation=1)
    inc, outc, k_size, stride, padding, dilation = 4, 8, 3, 1, 1, 1
    N, H, W = 2, 16, 16

    key = jax.random.PRNGKey(0)
    kx, kwt, kb = jax.random.split(key, 3)

    x = jax.random.normal(kx, (N, inc, H, W), dtype=jnp.float32)
    fan_in = inc * k_size * k_size
    bound = 1.0 / (fan_in ** 0.5)
    weight = jax.random.uniform(kwt, (outc, inc, k_size, k_size),
                                minval=-bound, maxval=bound, dtype=jnp.float32)
    bias = jax.random.uniform(kb, (outc,), minval=-bound, maxval=bound,
                              dtype=jnp.float32)
    gamma = jnp.ones((outc,), dtype=jnp.float32)    # BatchNorm2d default init
    beta = jnp.zeros((outc,), dtype=jnp.float32)

    out = conv2d_bn_forward(x, weight, bias, gamma, beta,
                            stride=stride, padding=padding, dilation=dilation)
    out = jax.block_until_ready(out)

    # Reference uses the same bf16-rounded operands so the check isolates the
    # kernel math (f32 accumulation / BN) from intentional bf16 quantization.
    x_q = x.astype(jnp.bfloat16).astype(jnp.float32)
    w_q = weight.astype(jnp.bfloat16).astype(jnp.float32)
    ref = _reference(x_q, w_q, bias, gamma, beta,
                     stride=stride, padding=padding, dilation=dilation, eps=1e-5)

    assert out.shape == (N, outc, H, W)
    max_err = float(jnp.max(jnp.abs(out - ref)))
    assert max_err < 2e-3, max_err

    print("KERNEL_OK")
</pallas_src>

<mosaic_0001>
module attributes {stable_mosaic.version = 11 : i64} {
  func.func @_conv_stats_kernel(%arg0: i32, %arg1: memref<128x128xbf16, #tpu.memory_space<vmem>>, %arg2: memref<128x128xbf16, #tpu.memory_space<vmem>>, %arg3: memref<1x128xf32, #tpu.memory_space<vmem>>, %arg4: memref<128x128xf32, #tpu.memory_space<vmem>>, %arg5: memref<8x128xf32, #tpu.memory_space<vmem>>) attributes {dimension_semantics = [#tpu.dimension_semantics<parallel>], iteration_bounds = array<i64: 4>, scalar_prefetch = 0 : i64, scratch_operands = 0 : i64, tpu.core_type = #tpu.core_type<tc>, window_params = [{transform_indices = @transform_0, window_bounds = array<i64: 128, 128>}, {pipeline_mode = #tpu.pipeline_mode<synchronous>, transform_indices = @transform_1, window_bounds = array<i64: 128, 128>}, {pipeline_mode = #tpu.pipeline_mode<synchronous>, transform_indices = @transform_2, window_bounds = array<i64: 1, 128>}, {transform_indices = @transform_3, window_bounds = array<i64: 128, 128>}, {transform_indices = @transform_4, window_bounds = array<i64: 8, 128>}]} {
    %c0 = arith.constant 0 : index
    %c0_0 = arith.constant 0 : index
    %0 = vector.load %arg1[%c0, %c0_0] : memref<128x128xbf16, #tpu.memory_space<vmem>>, vector<128x128xbf16>
    %c0_1 = arith.constant 0 : index
    %c0_2 = arith.constant 0 : index
    %1 = vector.load %arg2[%c0_1, %c0_2] : memref<128x128xbf16, #tpu.memory_space<vmem>>, vector<128x128xbf16>
    %cst = arith.constant dense<0.000000e+00> : vector<128x128xf32>
    %2 = tpu.matmul %0, %1, %cst {dimension_numbers = #tpu.dot_dimension_numbers<[1], [0], [0], [1], [0, 0, 1, 1], [], []>} : vector<128x128xbf16>, vector<128x128xbf16>, vector<128x128xf32> -> vector<128x128xf32>
    %c0_3 = arith.constant 0 : index
    %c0_4 = arith.constant 0 : index
    %3 = vector.load %arg3[%c0_3, %c0_4] : memref<1x128xf32, #tpu.memory_space<vmem>>, vector<1x128xf32>
    %4 = vector.broadcast %3 : vector<1x128xf32> to vector<128x128xf32>
    %5 = arith.addf %2, %4 : vector<128x128xf32>
    %c0_5 = arith.constant 0 : index
    %c0_6 = arith.constant 0 : index
    %6 = vector.load %arg4[%c0_5, %c0_6] : memref<128x128xf32, #tpu.memory_space<vmem>>, vector<128x128xf32>
    tpu.vector_store %arg4[%c0_5, %c0_6], %5 {strides = array<i32>} : memref<128x128xf32, #tpu.memory_space<vmem>>, vector<128x128xf32>,
    %c128_i32 = arith.constant 128 : i32
    %7 = arith.muli %arg0, %c128_i32 : i32
    %8 = tpu.iota {dimensions = array<i32: 0>} : vector<128x1xi32>
    %9 = vector.broadcast %7 : i32 to vector<128x1xi32>
    %10 = arith.addi %9, %8 : vector<128x1xi32>
    %c512_i32 = arith.constant 512 : i32
    %11 = vector.broadcast %c512_i32 : i32 to vector<128x1xi32>
    %12 = arith.cmpi slt, %10, %11 : vector<128x1xi32>
    %cst_7 = arith.constant 0.000000e+00 : f32
    %13 = vector.shape_cast %12 : vector<128x1xi1> to vector<128x1xi1>
    %14 = vector.broadcast %13 : vector<128x1xi1> to vector<128x128xi1>
    %15 = vector.broadcast %cst_7 : f32 to vector<128x128xf32>
    %16 = arith.select %14, %5, %15 : vector<128x128xi1>, vector<128x128xf32>
    %cst_8 = arith.constant dense<0.000000e+00> : vector<128xf32>
    %17 = vector.multi_reduction <add>, %16, %cst_8 [0] : vector<128x128xf32> to vector<128xf32>
    %18 = vector.shape_cast %17 : vector<128xf32> to vector<1x128xf32>
    %19 = arith.mulf %16, %16 : vector<128x128xf32>
    %cst_9 = arith.constant dense<0.000000e+00> : vector<128xf32>
    %20 = vector.multi_reduction <add>, %19, %cst_9 [0] : vector<128x128xf32> to vector<128xf32>
    %21 = vector.shape_cast %20 : vector<128xf32> to vector<1x128xf32>
    %cst_10 = arith.constant 0.000000e+00 : f32
    %22 = vector.broadcast %cst_10 : f32 to vector<6x128xf32>
    %23 = tpu.concatenate %18, %21, %22 in 0 : vector<1x128xf32>, vector<1x128xf32>, vector<6x128xf32> -> vector<8x128xf32>
    %c0_11 = arith.constant 0 : index
    %c0_12 = arith.constant 0 : index
    %24 = vector.load %arg5[%c0_11, %c0_12] : memref<8x128xf32, #tpu.memory_space<vmem>>, vector<8x128xf32>
    tpu.vector_store %arg5[%c0_11, %c0_12], %23 {strides = array<i32>} : memref<8x128xf32, #tpu.memory_space<vmem>>, vector<8x128xf32>,
    return
  }
  func.func @transform_0(%arg0: i32) -> (i32, i32) {
    %c0_i32 = arith.constant 0 : i32
    %c0_i32_0 = arith.constant 0 : i32
    return %arg0, %c0_i32 : i32, i32
  }
  func.func @transform_1(%arg0: i32) -> (i32, i32) {
    %c0_i32 = arith.constant 0 : i32
    %c0_i32_0 = arith.constant 0 : i32
    %c0_i32_1 = arith.constant 0 : i32
    return %c0_i32, %c0_i32_0 : i32, i32
  }
  func.func @transform_2(%arg0: i32) -> (i32, i32) {
    %c0_i32 = arith.constant 0 : i32
    %c0_i32_0 = arith.constant 0 : i32
    %c0_i32_1 = arith.constant 0 : i32
    return %c0_i32, %c0_i32_0 : i32, i32
  }
  func.func @transform_3(%arg0: i32) -> (i32, i32) {
    %c0_i32 = arith.constant 0 : i32
    %c0_i32_0 = arith.constant 0 : i32
    return %arg0, %c0_i32 : i32, i32
  }
  func.func @transform_4(%arg0: i32) -> (i32, i32) {
    %c0_i32 = arith.constant 0 : i32
    %c0_i32_0 = arith.constant 0 : i32
    return %arg0, %c0_i32 : i32, i32
  }
}

module attributes {stable_mosaic.version = 11 : i64} {
  func.func @_bn_apply_kernel(%arg0: i32, %arg1: memref<128x128xf32, #tpu.memory_space<vmem>>, %arg2: memref<1x128xf32, #tpu.memory_space<vmem>>, %arg3: memref<1x128xf32, #tpu.memory_space<vmem>>, %arg4: memref<128x128xf32, #tpu.memory_space<vmem>>) attributes {dimension_semantics = [#tpu.dimension_semantics<parallel>], iteration_bounds = array<i64: 4>, scalar_prefetch = 0 : i64, scratch_operands = 0 : i64, tpu.core_type = #tpu.core_type<tc>, window_params = [{transform_indices = @transform_0, window_bounds = array<i64: 128, 128>}, {pipeline_mode = #tpu.pipeline_mode<synchronous>, transform_indices = @transform_1, window_bounds = array<i64: 1, 128>}, {pipeline_mode = #tpu.pipeline_mode<synchronous>, transform_indices = @transform_2, window_bounds = array<i64: 1, 128>}, {transform_indices = @transform_3, window_bounds = array<i64: 128, 128>}]} {
    %c0 = arith.constant 0 : index
    %c0_0 = arith.constant 0 : index
    %0 = vector.load %arg1[%c0, %c0_0] : memref<128x128xf32, #tpu.memory_space<vmem>>, vector<128x128xf32>
    %c0_1 = arith.constant 0 : index
    %c0_2 = arith.constant 0 : index
    %1 = vector.load %arg2[%c0_1, %c0_2] : memref<1x128xf32, #tpu.memory_space<vmem>>, vector<1x128xf32>
    %2 = vector.broadcast %1 : vector<1x128xf32> to vector<128x128xf32>
    %3 = arith.mulf %0, %2 : vector<128x128xf32>
    %c0_3 = arith.constant 0 : index
    %c0_4 = arith.constant 0 : index
    %4 = vector.load %arg3[%c0_3, %c0_4] : memref<1x128xf32, #tpu.memory_space<vmem>>, vector<1x128xf32>
    %5 = vector.broadcast %4 : vector<1x128xf32> to vector<128x128xf32>
    %6 = arith.addf %3, %5 : vector<128x128xf32>
    %c0_5 = arith.constant 0 : index
    %c0_6 = arith.constant 0 : index
    %7 = vector.load %arg4[%c0_5, %c0_6] : memref<128x128xf32, #tpu.memory_space<vmem>>, vector<128x128xf32>
    tpu.vector_store %arg4[%c0_5, %c0_6], %6 {strides = array<i32>} : memref<128x128xf32, #tpu.memory_space<vmem>>, vector<128x128xf32>,
    return
  }
  func.func @transform_0(%arg0: i32) -> (i32, i32) {
    %c0_i32 = arith.constant 0 : i32
    %c0_i32_0 = arith.constant 0 : i32
    return %arg0, %c0_i32 : i32, i32
  }
  func.func @transform_1(%arg0: i32) -> (i32, i32) {
    %c0_i32 = arith.constant 0 : i32
    %c0_i32_0 = arith.constant 0 : i32
    %c0_i32_1 = arith.constant 0 : i32
    return %c0_i32, %c0_i32_0 : i32, i32
  }
  func.func @transform_2(%arg0: i32) -> (i32, i32) {
    %c0_i32 = arith.constant 0 : i32
    %c0_i32_0 = arith.constant 0 : i32
    %c0_i32_1 = arith.constant 0 : i32
    return %c0_i32, %c0_i32_0 : i32, i32
  }
  func.func @transform_3(%arg0: i32) -> (i32, i32) {
    %c0_i32 = arith.constant 0 : i32
    %c0_i32_0 = arith.constant 0 : i32
    return %arg0, %c0_i32 : i32, i32
  }
}

</mosaic_0001>

<llo_original>
// kernel: conv2d_bn_forward.3
$region0: #{conv2d_bn_forward.3}
  #allocation0 [shape = 'u32[]', space=smem, size = 0x4, offset = 0x4, fixed_abs, tag = 'smem constant byte address 0x4 - core index']
  #allocation1 [shape = 'u32[72,128]{1,0:T(1,128)}', space=vmem, size = 0x9000, scoped, tag = 'internal scratch']
  %s0 = inlined_call_operand.vmem [shape: f32[512,128], index: 0, kind: input, shape index: {}]
  %s1 = inlined_call_operand.vmem [shape: f32[1,128], index: 1, kind: input, shape index: {}]
  %s2 = inlined_call_operand.vmem [shape: f32[1,128], index: 2, kind: input, shape index: {}]
  %s3 = inlined_call_operand.vmem [shape: f32[512,128], index: 3, kind: output, shape index: {}]
  %s4 = sld [smem:[#allocation0]]
  $region45: #{conv2d_bn_forward.3} parent=0
    _
  %s6 = ssub.s32 1, %s4
  %s7 = scalar_select 0, %s6, %s4
  loop: start=0, step=1, limit=6
  $region2: #{conv2d_bn_forward.3} parent=0 // loop_pre_header
    _
  $region3: #{conv2d_bn_forward.3} parent=0 // loop_header
    %s9 = sphi 0, %s13
    %p10 = scmp.ge.s32.totalorder %s9, 6
    %s19 = sphi 0, %s21
    %s22 = sphi 0, %s19
    %s23 = sphi 0, %s22
    %s39 = sphi 0, %s23
    %s43 = sphi 0, %s43
    %s45 = sphi 0, %s43
    %s46 = sphi 0, %s45
    %s60 = sphi 0, %s46
    %s64 = sphi 0, %s64
    %s66 = sphi 0, %s64
    %s67 = sphi 0, %s66
    %s81 = sphi 0, %s67
    %s87 = sphi 0, %s89
    %s90 = sphi 0, %s87
    %s91 = sphi 0, %s90
    %s107 = sphi 0, %s91
  $region4: #{conv2d_bn_forward.3} parent=0 // loop_header_branch
    %12 = sbr.rel (%p10) target = $region8
  $region5: #{conv2d_bn_forward.3} parent=0 // loop_body
    %s14 = ssub.s32 %s9, 1
    %s15 = ssub.s32 %s9, 2
    %s16 = sadd.s32 %s9, 1
    %s17 = ssub.s32 %s9, %s16
    %p18 = scmp.eq.s32.totalorder %s17, 0
    %s20 = sadd.s32 %s19, 1
    %s21 = scalar_select %p18, %s19, %s20
    %p24 = pneg %p18
    %p25 = scmp.eq.s32.totalorder %s9, 3
    %p26 = por %p24, %p25
    %p27 = scmp.ne.s32.totalorder %s19, %s22
    %p28 = scmp.eq.s32.totalorder %s9, 0
    %p29 = por %p27, %p28
    %p30 = scmp.ne.s32.totalorder %s19, %s22
    %p31 = scmp.eq.s32.totalorder %s14, 3
    %p32 = por %p30, %p31
    %p33 = scmp.ne.s32.totalorder %s22, %s23
    %p34 = scmp.eq.s32.totalorder %s14, 0
    %p35 = por %p33, %p34
    %p36 = scmp.ne.s32.totalorder %s22, %s23
    %p37 = scmp.eq.s32.totalorder %s15, 3
    %p38 = por %p36, %p37
    %p40 = scmp.ne.s32.totalorder %s23, %s39
    %p41 = scmp.eq.s32.totalorder %s15, 0
    %p42 = por %p40, %p41
    %s44 = sadd.s32 %s43, 1
    %p47 = scmp.eq.s32.totalorder %s9, 3
    %p48 = scmp.ne.s32.totalorder %s43, %s45
    %p49 = scmp.eq.s32.totalorder %s9, 0
    %p50 = por %p48, %p49
    %p51 = scmp.ne.s32.totalorder %s43, %s45
    %p52 = scmp.eq.s32.totalorder %s14, 3
    %p53 = por %p51, %p52
    %p54 = scmp.ne.s32.totalorder %s45, %s46
    %p55 = scmp.eq.s32.totalorder %s14, 0
    %p56 = por %p54, %p55
    %p57 = scmp.ne.s32.totalorder %s45, %s46
    %p58 = scmp.eq.s32.totalorder %s15, 3
    %p59 = por %p57, %p58
    %p61 = scmp.ne.s32.totalorder %s46, %s60
    %p62 = scmp.eq.s32.totalorder %s15, 0
    %p63 = por %p61, %p62
    %s65 = sadd.s32 %s64, 1
    %p68 = scmp.eq.s32.totalorder %s9, 3
    %p69 = scmp.ne.s32.totalorder %s64, %s66
    %p70 = scmp.eq.s32.totalorder %s9, 0
    %p71 = por %p69, %p70
    %p72 = scmp.ne.s32.totalorder %s64, %s66
    %p73 = scmp.eq.s32.totalorder %s14, 3
    %p74 = por %p72, %p73
    %p75 = scmp.ne.s32.totalorder %s66, %s67
    %p76 = scmp.eq.s32.totalorder %s14, 0
    %p77 = por %p75, %p76
    %p78 = scmp.ne.s32.totalorder %s66, %s67
    %p79 = scmp.eq.s32.totalorder %s15, 3
    %p80 = por %p78, %p79
    %p82 = scmp.ne.s32.totalorder %s67, %s81
    %p83 = scmp.eq.s32.totalorder %s15, 0
    %p84 = por %p82, %p83
    %s85 = ssub.s32 %s9, %s16
    %p86 = scmp.eq.s32.totalorder %s85, 0
    %s88 = sadd.s32 %s87, 1
    %s89 = scalar_select %p86, %s87, %s88
    %p92 = pneg %p86
    %p93 = scmp.eq.s32.totalorder %s9, 3
    %p94 = por %p92, %p93
    %p95 = scmp.ne.s32.totalorder %s87, %s90
    %p96 = scmp.eq.s32.totalorder %s9, 0
    %p97 = por %p95, %p96
    %p98 = scmp.ne.s32.totalorder %s87, %s90
    %p99 = scmp.eq.s32.totalorder %s14, 3
    %p100 = por %p98, %p99
    %p101 = scmp.ne.s32.totalorder %s90, %s91
    %p102 = scmp.eq.s32.totalorder %s14, 0
    %p103 = por %p101, %p102
    %p104 = scmp.ne.s32.totalorder %s90, %s91
    %p105 = scmp.eq.s32.totalorder %s15, 3
    %p106 = por %p104, %p105
    %p108 = scmp.ne.s32.totalorder %s91, %s107
    %p109 = scmp.eq.s32.totalorder %s15, 0
    %p110 = por %p108, %p109
    %p111 = scmp.le.s32.totalorder 1, %s9
    %p112 = scmp.lt.s32.totalorder %s9, 5
    %p113 = pnand %p111, %p112
    %p114 = pneg %p113
    // Predicated region
    $region9: #{conv2d_bn_forward.3} parent=5 // pred_check
      _
    $region10: #{conv2d_bn_forward.3} parent=5 // pred_check_branch
      %116 = sbr.rel (%p113) target = $region12
    $region11: #{conv2d_bn_forward.3} parent=5 // pred_region
      %s117 = ssub.s32 %s9, 1
      // Predicated region
      $region13: #{conv2d_bn_forward.3} parent=11 // pred_check
        %p118 = pneg %p56
      $region14: #{conv2d_bn_forward.3} parent=11 // pred_check_branch
        %120 = sbr.rel (%p118) target = $region16
      $region15: #{conv2d_bn_forward.3} parent=11 // pred_region
        _
      $region16: #{conv2d_bn_forward.3} parent=11 // pred_fallthru
        _
      // Predicated region
      $region17: #{conv2d_bn_forward.3} parent=11 // pred_check
        %p121 = pneg %p77
      $region18: #{conv2d_bn_forward.3} parent=11 // pred_check_branch
        %123 = sbr.rel (%p121) target = $region20
      $region19: #{conv2d_bn_forward.3} parent=11 // pred_region
        _
      $region20: #{conv2d_bn_forward.3} parent=11 // pred_fallthru
        _
    $region12: #{conv2d_bn_forward.3} parent=5 // pred_fallthru
      _
    %p124 = scmp.lt.s32.totalorder %s9, 4
    // Predicated region
    $region21: #{conv2d_bn_forward.3} parent=5 // pred_check
      %p125 = pneg %p124
    $region22: #{conv2d_bn_forward.3} parent=5 // pred_check_branch
      %127 = sbr.rel (%p125) target = $region24
    $region23: #{conv2d_bn_forward.3} parent=5 // pred_region
      // Predicated region
      $region25: #{conv2d_bn_forward.3} parent=23 // pred_check
        %p128 = pneg %p29
      $region26: #{conv2d_bn_forward.3} parent=23 // pred_check_branch
        %130 = sbr.rel (%p128) target = $region28
      $region27: #{conv2d_bn_forward.3} parent=23 // pred_region
        %s131 = smul.u32 16, %s9
        %p132 = scmp.lt.s32.totalorder %s131, 63
        %s133 = scalar_select %p132, %s131, 63
        %s134 = smul.addr %s133, 8
        %s135 = scalar_lea.vmem %s0, %s134
        %s136 = smul.u32 16, %s9
      $region28: #{conv2d_bn_forward.3} parent=23 // pred_fallthru
        _
    $region24: #{conv2d_bn_forward.3} parent=5 // pred_fallthru
      _
    %p137 = scmp.le.s32.totalorder 1, %s9
    %p138 = scmp.lt.s32.totalorder %s9, 5
    %p139 = pnand %p137, %p138
    %p140 = pneg %p139
    // Predicated region
    $region29: #{conv2d_bn_forward.3} parent=5 // pred_check
      _
    $region30: #{conv2d_bn_forward.3} parent=5 // pred_check_branch
      %142 = sbr.rel (%p139) target = $region32
    $region31: #{conv2d_bn_forward.3} parent=5 // pred_region
      %s143 = ssub.s32 %s9, 1
      %s144 = smul.u32 16, %s14
      %p145 = scmp.lt.s32.totalorder %s144, 63
      %s146 = scalar_select %p145, %s144, 63
      %s147 = smul.addr %s146, 8
      %s148 = scalar_lea.vmem %s0, %s147
      %p149 = pneg %p35
      %p150 = pneg %p32
      %p151 = pneg %p56
      %p152 = pneg %p53
      %p153 = pneg %p77
      %p154 = pneg %p74
      %p155 = pneg %p103
      %p156 = pneg %p100
      %s157 = smul.u32 16, %s14
      %p158 = scmp.lt.s32.totalorder %s157, 63
      %s159 = scalar_select %p158, %s157, 63
      %s160 = smul.addr %s159, 8
      %s161 = scalar_lea.vmem %s3, %s160
      %s162 = smul.u32 16, %s14
      %p163 = scmp.lt.s32.totalorder %s162, 63
      %s164 = scalar_select %p163, %s162, 63
      %s165 = smul.addr %s164, 8
      %s166 = scalar_lea.vmem %s0, %s165
      %s167 = smul.u32 16, %s14
      %s168 = smul.u32 16, %s14
      %p169 = scmp.lt.s32.totalorder %s168, 63
      %s170 = scalar_select %p169, %s168, 63
      %s171 = smul.addr %s170, 8
      %s172 = scalar_lea.vmem %s3, %s171
      %s173 = smul.u32 16, %s14
      %v174 = vld [vmem:[%s166] sm:$0xff]
      %v175 = vld [vmem:[%s166 + $0x8] sm:$0xff]
      %v176 = vld [vmem:[%s166 + $0x10] sm:$0xff]
      %v177 = vld [vmem:[%s166 + $0x18] sm:$0xff]
      %v178 = vld [vmem:[%s166 + $0x20] sm:$0xff]
      %v179 = vld [vmem:[%s166 + $0x28] sm:$0xff]
      %v180 = vld [vmem:[%s166 + $0x30] sm:$0xff]
      %v181 = vld [vmem:[%s166 + $0x38] sm:$0xff]
      %v182 = vld [vmem:[%s166 + $0x40] sm:$0xff]
      %v183 = vld [vmem:[%s166 + $0x48] sm:$0xff]
      %v184 = vld [vmem:[%s166 + $0x50] sm:$0xff]
      %v185 = vld [vmem:[%s166 + $0x58] sm:$0xff]
      %v186 = vld [vmem:[%s166 + $0x60] sm:$0xff]
      %v187 = vld [vmem:[%s166 + $0x68] sm:$0xff]
      %v188 = vld [vmem:[%s166 + $0x70] sm:$0xff]
      %v189 = vld [vmem:[%s166 + $0x78] sm:$0xff]
      %v190 = vld [vmem:[%s1] sm:$0x1]
      %v192 = vperm.slane %v190, 0
      %v194 = vmul.f32 %v174, %v192
      %v195 = vmul.f32 %v175, %v192
      %v196 = vmul.f32 %v176, %v192
      %v197 = vmul.f32 %v177, %v192
      %v198 = vmul.f32 %v178, %v192
      %v199 = vmul.f32 %v179, %v192
      %v200 = vmul.f32 %v180, %v192
      %v201 = vmul.f32 %v181, %v192
      %v202 = vmul.f32 %v182, %v192
      %v203 = vmul.f32 %v183, %v192
      %v204 = vmul.f32 %v184, %v192
      %v205 = vmul.f32 %v185, %v192
      %v206 = vmul.f32 %v186, %v192
      %v207 = vmul.f32 %v187, %v192
      %v208 = vmul.f32 %v188, %v192
      %v209 = vmul.f32 %v189, %v192
      %v210 = vld [vmem:[%s2] sm:$0x1]
      %v212 = vperm.slane %v210, 0
      %v214 = vadd.f32 %v194, %v212
      %v215 = vadd.f32 %v195, %v212
      %v216 = vadd.f32 %v196, %v212
      %v217 = vadd.f32 %v197, %v212
      %v218 = vadd.f32 %v198, %v212
      %v219 = vadd.f32 %v199, %v212
      %v220 = vadd.f32 %v200, %v212
      %v221 = vadd.f32 %v201, %v212
      %v222 = vadd.f32 %v202, %v212
      %v223 = vadd.f32 %v203, %v212
      %v224 = vadd.f32 %v204, %v212
      %v225 = vadd.f32 %v205, %v212
      %v226 = vadd.f32 %v206, %v212
      %v227 = vadd.f32 %v207, %v212
      %v228 = vadd.f32 %v208, %v212
      %v229 = vadd.f32 %v209, %v212
      %230 = vst [vmem:[%s172] sm:$0xff] %v214
      %231 = vst [vmem:[%s172 + $0x8] sm:$0xff] %v215
      %232 = vst [vmem:[%s172 + $0x10] sm:$0xff] %v216
      %233 = vst [vmem:[%s172 + $0x18] sm:$0xff] %v217
      %234 = vst [vmem:[%s172 + $0x20] sm:$0xff] %v218
      %235 = vst [vmem:[%s172 + $0x28] sm:$0xff] %v219
      %236 = vst [vmem:[%s172 + $0x30] sm:$0xff] %v220
      %237 = vst [vmem:[%s172 + $0x38] sm:$0xff] %v221
      %238 = vst [vmem:[%s172 + $0x40] sm:$0xff] %v222
      %239 = vst [vmem:[%s172 + $0x48] sm:$0xff] %v223
      %240 = vst [vmem:[%s172 + $0x50] sm:$0xff] %v224
      %241 = vst [vmem:[%s172 + $0x58] sm:$0xff] %v225
      %242 = vst [vmem:[%s172 + $0x60] sm:$0xff] %v226
      %243 = vst [vmem:[%s172 + $0x68] sm:$0xff] %v227
      %244 = vst [vmem:[%s172 + $0x70] sm:$0xff] %v228
      %245 = vst [vmem:[%s172 + $0x78] sm:$0xff] %v229
      %s246 = smul.u32 16, %s14
      %p247 = scmp.lt.s32.totalorder %s246, 63
      %s248 = scalar_select %p247, %s246, 63
      %s249 = smul.addr %s248, 8
      %s250 = scalar_lea.vmem %s3, %s249
      // Predicated region
      $region33: #{conv2d_bn_forward.3} parent=31 // pred_check
        %p251 = pneg %p100
      $region34: #{conv2d_bn_forward.3} parent=31 // pred_check_branch
        %253 = sbr.rel (%p251) target = $region36
      $region35: #{conv2d_bn_forward.3} parent=31 // pred_region
        %s254 = smul.u32 16, %s14
      $region36: #{conv2d_bn_forward.3} parent=31 // pred_fallthru
        _
    $region32: #{conv2d_bn_forward.3} parent=5 // pred_fallthru
      _
    %p255 = scmp.le.s32.totalorder 2, %s9
    // Predicated region
    $region37: #{conv2d_bn_forward.3} parent=5 // pred_check
      %p256 = pneg %p255
    $region38: #{conv2d_bn_forward.3} parent=5 // pred_check_branch
      %258 = sbr.rel (%p256) target = $region40
    $region39: #{conv2d_bn_forward.3} parent=5 // pred_region
      %s259 = ssub.s32 %s9, 2
      // Predicated region
      $region41: #{conv2d_bn_forward.3} parent=39 // pred_check
        %p260 = pneg %p106
      $region42: #{conv2d_bn_forward.3} parent=39 // pred_check_branch
        %262 = sbr.rel (%p260) target = $region44
      $region43: #{conv2d_bn_forward.3} parent=39 // pred_region
        %s263 = smul.u32 16, %s15
        %p264 = scmp.lt.s32.totalorder %s263, 63
        %s265 = scalar_select %p264, %s263, 63
        %s266 = smul.addr %s265, 8
        %s267 = scalar_lea.vmem %s3, %s266
      $region44: #{conv2d_bn_forward.3} parent=39 // pred_fallthru
        _
    $region40: #{conv2d_bn_forward.3} parent=5 // pred_fallthru
      _
  $region6: #{conv2d_bn_forward.3} parent=0 // loop_footer
    %s13 = sadd.s32 1, %s9
  $region7: #{conv2d_bn_forward.3} parent=0 // loop_footer_branch
    %8 = sbr.rel target = $region3
  $region8: #{conv2d_bn_forward.3} parent=0 // loop_exit
    _

// kernel: conv2d_bn_forward.2
$region0: #{conv2d_bn_forward.2}
  #allocation0 [shape = 'u32[]', space=smem, size = 0x4, offset = 0x4, fixed_abs, tag = 'smem constant byte address 0x4 - core index']
  #allocation1 [shape = 'u32[72,128]{1,0:T(1,128)}', space=vmem, size = 0x9000, scoped, tag = 'internal scratch']
  %s0 = inlined_call_operand.vmem [shape: bf16[512,128], index: 0, kind: input, shape index: {}]
  %s1 = inlined_call_operand.vmem [shape: bf16[128,128], index: 1, kind: input, shape index: {}]
  %s2 = inlined_call_operand.vmem [shape: f32[1,128], index: 2, kind: input, shape index: {}]
  %s3 = inlined_call_operand.vmem [shape: f32[512,128], index: 3, kind: output, shape index: {0}]
  %s4 = inlined_call_operand.vmem [shape: f32[32,128], index: 4, kind: output, shape index: {1}]
  %5 = xla_tuple %s3, %s4
  %s6 = sld [smem:[#allocation0]]
  $region53: #{conv2d_bn_forward.2} parent=0
    _
  %s8 = ssub.s32 1, %s6
  %s9 = scalar_select 0, %s8, %s6
  loop: start=0, step=1, limit=6
  $region2: #{conv2d_bn_forward.2} parent=0 // loop_pre_header
    _
  $region3: #{conv2d_bn_forward.2} parent=0 // loop_header
    %s11 = sphi 0, %s15
    %p12 = scmp.ge.s32.totalorder %s11, 6
    %s21 = sphi 0, %s23
    %s24 = sphi 0, %s21
    %s25 = sphi 0, %s24
    %s41 = sphi 0, %s25
    %s45 = sphi 0, %s45
    %s47 = sphi 0, %s45
    %s48 = sphi 0, %s47
    %s62 = sphi 0, %s48
    %s66 = sphi 0, %s66
    %s68 = sphi 0, %s66
    %s69 = sphi 0, %s68
    %s83 = sphi 0, %s69
    %s89 = sphi 0, %s91
    %s92 = sphi 0, %s89
    %s93 = sphi 0, %s92
    %s109 = sphi 0, %s93
    %s115 = sphi 0, %s117
    %s118 = sphi 0, %s115
    %s119 = sphi 0, %s118
    %s135 = sphi 0, %s119
  $region4: #{conv2d_bn_forward.2} parent=0 // loop_header_branch
    %14 = sbr.rel (%p12) target = $region8
  $region5: #{conv2d_bn_forward.2} parent=0 // loop_body
    %s16 = ssub.s32 %s11, 1
    %s17 = ssub.s32 %s11, 2
    %s18 = sadd.s32 %s11, 1
    %s19 = ssub.s32 %s11, %s18
    %p20 = scmp.eq.s32.totalorder %s19, 0
    %s22 = sadd.s32 %s21, 1
    %s23 = scalar_select %p20, %s21, %s22
    %p26 = pneg %p20
    %p27 = scmp.eq.s32.totalorder %s11, 3
    %p28 = por %p26, %p27
    %p29 = scmp.ne.s32.totalorder %s21, %s24
    %p30 = scmp.eq.s32.totalorder %s11, 0
    %p31 = por %p29, %p30
    %p32 = scmp.ne.s32.totalorder %s21, %s24
    %p33 = scmp.eq.s32.totalorder %s16, 3
    %p34 = por %p32, %p33
    %p35 = scmp.ne.s32.totalorder %s24, %s25
    %p36 = scmp.eq.s32.totalorder %s16, 0
    %p37 = por %p35, %p36
    %p38 = scmp.ne.s32.totalorder %s24, %s25
    %p39 = scmp.eq.s32.totalorder %s17, 3
    %p40 = por %p38, %p39
    %p42 = scmp.ne.s32.totalorder %s25, %s41
    %p43 = scmp.eq.s32.totalorder %s17, 0
    %p44 = por %p42, %p43
    %s46 = sadd.s32 %s45, 1
    %p49 = scmp.eq.s32.totalorder %s11, 3
    %p50 = scmp.ne.s32.totalorder %s45, %s47
    %p51 = scmp.eq.s32.totalorder %s11, 0
    %p52 = por %p50, %p51
    %p53 = scmp.ne.s32.totalorder %s45, %s47
    %p54 = scmp.eq.s32.totalorder %s16, 3
    %p55 = por %p53, %p54
    %p56 = scmp.ne.s32.totalorder %s47, %s48
    %p57 = scmp.eq.s32.totalorder %s16, 0
    %p58 = por %p56, %p57
    %p59 = scmp.ne.s32.totalorder %s47, %s48
    %p60 = scmp.eq.s32.totalorder %s17, 3
    %p61 = por %p59, %p60
    %p63 = scmp.ne.s32.totalorder %s48, %s62
    %p64 = scmp.eq.s32.totalorder %s17, 0
    %p65 = por %p63, %p64
    %s67 = sadd.s32 %s66, 1
    %p70 = scmp.eq.s32.totalorder %s11, 3
    %p71 = scmp.ne.s32.totalorder %s66, %s68
    %p72 = scmp.eq.s32.totalorder %s11, 0
    %p73 = por %p71, %p72
    %p74 = scmp.ne.s32.totalorder %s66, %s68
    %p75 = scmp.eq.s32.totalorder %s16, 3
    %p76 = por %p74, %p75
    %p77 = scmp.ne.s32.totalorder %s68, %s69
    %p78 = scmp.eq.s32.totalorder %s16, 0
    %p79 = por %p77, %p78
    %p80 = scmp.ne.s32.totalorder %s68, %s69
    %p81 = scmp.eq.s32.totalorder %s17, 3
    %p82 = por %p80, %p81
    %p84 = scmp.ne.s32.totalorder %s69, %s83
    %p85 = scmp.eq.s32.totalorder %s17, 0
    %p86 = por %p84, %p85
    %s87 = ssub.s32 %s11, %s18
    %p88 = scmp.eq.s32.totalorder %s87, 0
    %s90 = sadd.s32 %s89, 1
    %s91 = scalar_select %p88, %s89, %s90
    %p94 = pneg %p88
    %p95 = scmp.eq.s32.totalorder %s11, 3
    %p96 = por %p94, %p95
    %p97 = scmp.ne.s32.totalorder %s89, %s92
    %p98 = scmp.eq.s32.totalorder %s11, 0
    %p99 = por %p97, %p98
    %p100 = scmp.ne.s32.totalorder %s89, %s92
    %p101 = scmp.eq.s32.totalorder %s16, 3
    %p102 = por %p100, %p101
    %p103 = scmp.ne.s32.totalorder %s92, %s93
    %p104 = scmp.eq.s32.totalorder %s16, 0
    %p105 = por %p103, %p104
    %p106 = scmp.ne.s32.totalorder %s92, %s93
    %p107 = scmp.eq.s32.totalorder %s17, 3
    %p108 = por %p106, %p107
    %p110 = scmp.ne.s32.totalorder %s93, %s109
    %p111 = scmp.eq.s32.totalorder %s17, 0
    %p112 = por %p110, %p111
    %s113 = ssub.s32 %s11, %s18
    %p114 = scmp.eq.s32.totalorder %s113, 0
    %s116 = sadd.s32 %s115, 1
    %s117 = scalar_select %p114, %s115, %s116
    %p120 = pneg %p114
    %p121 = scmp.eq.s32.totalorder %s11, 3
    %p122 = por %p120, %p121
    %p123 = scmp.ne.s32.totalorder %s115, %s118
    %p124 = scmp.eq.s32.totalorder %s11, 0
    %p125 = por %p123, %p124
    %p126 = scmp.ne.s32.totalorder %s115, %s118
    %p127 = scmp.eq.s32.totalorder %s16, 3
    %p128 = por %p126, %p127
    %p129 = scmp.ne.s32.totalorder %s118, %s119
    %p130 = scmp.eq.s32.totalorder %s16, 0
    %p131 = por %p129, %p130
    %p132 = scmp.ne.s32.totalorder %s118, %s119
    %p133 = scmp.eq.s32.totalorder %s17, 3
    %p134 = por %p132, %p133
    %p136 = scmp.ne.s32.totalorder %s119, %s135
    %p137 = scmp.eq.s32.totalorder %s17, 0
    %p138 = por %p136, %p137
    %p139 = scmp.le.s32.totalorder 1, %s11
    %p140 = scmp.lt.s32.totalorder %s11, 5
    %p141 = pnand %p139, %p140
    %p142 = pneg %p141
    // Predicated region
    $region9: #{conv2d_bn_forward.2} parent=5 // pred_check
      _
    $region10: #{conv2d_bn_forward.2} parent=5 // pred_check_branch
      %144 = sbr.rel (%p141) target = $region12
    $region11: #{conv2d_bn_forward.2} parent=5 // pred_region
      %s145 = ssub.s32 %s11, 1
      // Predicated region
      $region13: #{conv2d_bn_forward.2} parent=11 // pred_check
        %p146 = pneg %p58
      $region14: #{conv2d_bn_forward.2} parent=11 // pred_check_branch
        %148 = sbr.rel (%p146) target = $region16
      $region15: #{conv2d_bn_forward.2} parent=11 // pred_region
        _
      $region16: #{conv2d_bn_forward.2} parent=11 // pred_fallthru
        _
      // Predicated region
      $region17: #{conv2d_bn_forward.2} parent=11 // pred_check
        %p149 = pneg %p79
      $region18: #{conv2d_bn_forward.2} parent=11 // pred_check_branch
        %151 = sbr.rel (%p149) target = $region20
      $region19: #{conv2d_bn_forward.2} parent=11 // pred_region
        _
      $region20: #{conv2d_bn_forward.2} parent=11 // pred_fallthru
        _
    $region12: #{conv2d_bn_forward.2} parent=5 // pred_fallthru
      _
    %p152 = scmp.lt.s32.totalorder %s11, 4
    // Predicated region
    $region21: #{conv2d_bn_forward.2} parent=5 // pred_check
      %p153 = pneg %p152
    $region22: #{conv2d_bn_forward.2} parent=5 // pred_check_branch
      %155 = sbr.rel (%p153) target = $region24
    $region23: #{conv2d_bn_forward.2} parent=5 // pred_region
      // Predicated region
      $region25: #{conv2d_bn_forward.2} parent=23 // pred_check
        %p156 = pneg %p31
      $region26: #{conv2d_bn_forward.2} parent=23 // pred_check_branch
        %158 = sbr.rel (%p156) target = $region28
      $region27: #{conv2d_bn_forward.2} parent=23 // pred_region
        %s159 = smul.u32 16, %s11
        %p160 = scmp.lt.s32.totalorder %s159, 63
        %s161 = scalar_select %p160, %s159, 63
        %s162 = smul.addr %s161, 4
        %s163 = scalar_lea.vmem %s0, %s162
        %s164 = smul.u32 16, %s11
      $region28: #{conv2d_bn_forward.2} parent=23 // pred_fallthru
        _
    $region24: #{conv2d_bn_forward.2} parent=5 // pred_fallthru
      _
    %p165 = scmp.le.s32.totalorder 1, %s11
    %p166 = scmp.lt.s32.totalorder %s11, 5
    %p167 = pnand %p165, %p166
    %p168 = pneg %p167
    // Predicated region
    $region29: #{conv2d_bn_forward.2} parent=5 // pred_check
      _
    $region30: #{conv2d_bn_forward.2} parent=5 // pred_check_branch
      %170 = sbr.rel (%p167) target = $region32
    $region31: #{conv2d_bn_forward.2} parent=5 // pred_region
      %s171 = ssub.s32 %s11, 1
      %s172 = smul.u32 16, %s16
      %p173 = scmp.lt.s32.totalorder %s172, 63
      %s174 = scalar_select %p173, %s172, 63
      %s175 = smul.addr %s174, 4
      %s176 = scalar_lea.vmem %s0, %s175
      %p177 = pneg %p37
      %p178 = pneg %p34
      %p179 = pneg %p58
      %p180 = pneg %p55
      %p181 = pneg %p79
      %p182 = pneg %p76
      %p183 = pneg %p105
      %p184 = pneg %p102
      %s185 = smul.u32 16, %s16
      %p186 = scmp.lt.s32.totalorder %s185, 63
      %s187 = scalar_select %p186, %s185, 63
      %s188 = smul.addr %s187, 8
      %s189 = scalar_lea.vmem %s3, %s188
      %p190 = pneg %p131
      %p191 = pneg %p128
      %p192 = scmp.lt.s32.totalorder %s16, 3
      %s193 = scalar_select %p192, %s16, 3
      %s194 = smul.addr %s193, 8
      %s195 = scalar_lea.vmem %s4, %s194
      %s196 = smul.u32 16, %s16
      %p197 = scmp.lt.s32.totalorder %s196, 63
      %s198 = scalar_select %p197, %s196, 63
      %s199 = smul.addr %s198, 4
      %s200 = scalar_lea.vmem %s0, %s199
      %s201 = smul.u32 16, %s16
      %s202 = smul.u32 16, %s16
      %p203 = scmp.lt.s32.totalorder %s202, 63
      %s204 = scalar_select %p203, %s202, 63
      %s205 = smul.addr %s204, 8
      %s206 = scalar_lea.vmem %s3, %s205
      %s207 = smul.u32 16, %s16
      %p208 = scmp.lt.s32.totalorder %s16, 3
      %s209 = scalar_select %p208, %s16, 3
      %s210 = smul.addr %s209, 8
      %s211 = scalar_lea.vmem %s4, %s210
      %v212 = vld [vmem:[%s200] sm:$0xf]
      %v213 = vld [vmem:[%s200 + $0x4] sm:$0xf]
      %v214 = vld [vmem:[%s200 + $0x8] sm:$0xf]
      %v215 = vld [vmem:[%s200 + $0xc] sm:$0xf]
      %v216 = vld [vmem:[%s200 + $0x10] sm:$0xf]
      %v217 = vld [vmem:[%s200 + $0x14] sm:$0xf]
      %v218 = vld [vmem:[%s200 + $0x18] sm:$0xf]
      %v219 = vld [vmem:[%s200 + $0x1c] sm:$0xf]
      %v220 = vld [vmem:[%s200 + $0x20] sm:$0xf]
      %v221 = vld [vmem:[%s200 + $0x24] sm:$0xf]
      %v222 = vld [vmem:[%s200 + $0x28] sm:$0xf]
      %v223 = vld [vmem:[%s200 + $0x2c] sm:$0xf]
      %v224 = vld [vmem:[%s200 + $0x30] sm:$0xf]
      %v225 = vld [vmem:[%s200 + $0x34] sm:$0xf]
      %v226 = vld [vmem:[%s200 + $0x38] sm:$0xf]
      %v227 = vld [vmem:[%s200 + $0x3c] sm:$0xf]
      %v228 = vld [vmem:[%s1] sm:$0xf]
      %v229 = vld [vmem:[%s1 + $0x4] sm:$0xf]
      %v230 = vld [vmem:[%s1 + $0x8] sm:$0xf]
      %v231 = vld [vmem:[%s1 + $0xc] sm:$0xf]
      %v232 = vld [vmem:[%s1 + $0x10] sm:$0xf]
      %v233 = vld [vmem:[%s1 + $0x14] sm:$0xf]
      %v234 = vld [vmem:[%s1 + $0x18] sm:$0xf]
      %v235 = vld [vmem:[%s1 + $0x1c] sm:$0xf]
      %v236 = vld [vmem:[%s1 + $0x20] sm:$0xf]
      %v237 = vld [vmem:[%s1 + $0x24] sm:$0xf]
      %v238 = vld [vmem:[%s1 + $0x28] sm:$0xf]
      %v239 = vld [vmem:[%s1 + $0x2c] sm:$0xf]
      %v240 = vld [vmem:[%s1 + $0x30] sm:$0xf]
      %v241 = vld [vmem:[%s1 + $0x34] sm:$0xf]
      %v242 = vld [vmem:[%s1 + $0x38] sm:$0xf]
      %v243 = vld [vmem:[%s1 + $0x3c] sm:$0xf]
      %v244 = vld [vmem:[%s2] sm:$0x1]
      %v246 = vperm.slane %v244, 0
      %v264 = vunpack.c.l.b16 %v212
      %v265 = vunpack.c.l.b16 %v213
      %v266 = vunpack.c.l.b16 %v214
      %v267 = vunpack.c.l.b16 %v215
      %v268 = vunpack.c.l.b16 %v216
      %v269 = vunpack.c.l.b16 %v217
      %v270 = vunpack.c.l.b16 %v218
      %v271 = vunpack.c.l.b16 %v219
      %v272 = vunpack.c.l.b16 %v220
      %v273 = vunpack.c.l.b16 %v221
      %v274 = vunpack.c.l.b16 %v222
      %v275 = vunpack.c.l.b16 %v223
      %v276 = vunpack.c.l.b16 %v224
      %v277 = vunpack.c.l.b16 %v225
      %v278 = vunpack.c.l.b16 %v226
      %v279 = vunpack.c.l.b16 %v227
      %v280 = vpack.c.b16 %v265, %v264
      %v281 = vpack.c.b16 %v267, %v266
      %v282 = vpack.c.b16 %v269, %v268
      %v283 = vpack.c.b16 %v271, %v270
      %v284 = vpack.c.b16 %v273, %v272
      %v285 = vpack.c.b16 %v275, %v274
      %v286 = vpack.c.b16 %v277, %v276
      %v287 = vpack.c.b16 %v279, %v278
      %v312 = vunpack.c.l.b16 %v228
      %v313 = vunpack.c.l.b16 %v229
      %v314 = vunpack.c.l.b16 %v230
      %v315 = vunpack.c.l.b16 %v231
      %v316 = vunpack.c.l.b16 %v232
      %v317 = vunpack.c.l.b16 %v233
      %v318 = vunpack.c.l.b16 %v234
      %v319 = vunpack.c.l.b16 %v235
      %v320 = vunpack.c.l.b16 %v236
      %v321 = vunpack.c.l.b16 %v237
      %v322 = vunpack.c.l.b16 %v238
      %v323 = vunpack.c.l.b16 %v239
      %v324 = vunpack.c.l.b16 %v240
      %v325 = vunpack.c.l.b16 %v241
      %v326 = vunpack.c.l.b16 %v242
      %v327 = vunpack.c.l.b16 %v243
      %v328 = vpack.c.b16 %v313, %v312
      %v329 = vpack.c.b16 %v315, %v314
      %v330 = vpack.c.b16 %v317, %v316
      %v331 = vpack.c.b16 %v319, %v318
      %v332 = vpack.c.b16 %v321, %v320
      %v333 = vpack.c.b16 %v323, %v322
      %v334 = vpack.c.b16 %v325, %v324
      %v335 = vpack.c.b16 %v327, %v326
      %344 = vmatpush.bf16.msra.mxu0 %v335
      %345 = vmatpush.bf16.msra.mxu0 %v334
      %346 = vmatpush.bf16.msra.mxu0 %v333
      %347 = vmatpush.bf16.msra.mxu0 %v332
      %348 = vmatpush.bf16.msra.mxu0 %v331
      %349 = vmatpush.bf16.msra.mxu0 %v330
      %350 = vmatpush.bf16.msra.mxu0 %v329
      %351 = vmatpush.bf16.msra.mxu0 %v328
      %352 = vmatmul.bf16.gmra.mxu0 %v280
      %v353 = vpop.f32.mrf.mxu0
      %v354 = vadd.f32 %v246, %v353
      %v355 = vpop.f32.mrf.mxu0
      %v356 = vadd.f32 %v246, %v355
      %357 = vmatmul.bf16.gmra.mxu0 %v281
      %v358 = vpop.f32.mrf.mxu0
      %v359 = vadd.f32 %v246, %v358
      %v360 = vpop.f32.mrf.mxu0
      %v361 = vadd.f32 %v246, %v360
      %362 = vmatmul.bf16.gmra.mxu0 %v282
      %v363 = vpop.f32.mrf.mxu0
      %v364 = vadd.f32 %v246, %v363
      %v365 = vpop.f32.mrf.mxu0
      %v366 = vadd.f32 %v246, %v365
      %367 = vmatmul.bf16.gmra.mxu0 %v283
      %v368 = vpop.f32.mrf.mxu0
      %v369 = vadd.f32 %v246, %v368
      %v370 = vpop.f32.mrf.mxu0
      %v371 = vadd.f32 %v246, %v370
      %372 = vmatmul.bf16.gmra.mxu0 %v284
      %v373 = vpop.f32.mrf.mxu0
      %v374 = vadd.f32 %v246, %v373
      %v375 = vpop.f32.mrf.mxu0
      %v376 = vadd.f32 %v246, %v375
      %377 = vmatmul.bf16.gmra.mxu0 %v285
      %v378 = vpop.f32.mrf.mxu0
      %v379 = vadd.f32 %v246, %v378
      %v380 = vpop.f32.mrf.mxu0
      %v381 = vadd.f32 %v246, %v380
      %382 = vmatmul.bf16.gmra.mxu0 %v286
      %v383 = vpop.f32.mrf.mxu0
      %v384 = vadd.f32 %v246, %v383
      %v385 = vpop.f32.mrf.mxu0
      %v386 = vadd.f32 %v246, %v385
      %387 = vmatmul.bf16.gmra.mxu0 %v287
      %v388 = vpop.f32.mrf.mxu0
      %v389 = vadd.f32 %v246, %v388
      %v390 = vpop.f32.mrf.mxu0
      %v391 = vadd.f32 %v246, %v390
      %392 = vdwg.mxu0
      %393 = vst [vmem:[%s206] sm:$0xff] %v354
      %394 = vst [vmem:[%s206 + $0x8] sm:$0xff] %v356
      %395 = vst [vmem:[%s206 + $0x10] sm:$0xff] %v359
      %396 = vst [vmem:[%s206 + $0x18] sm:$0xff] %v361
      %397 = vst [vmem:[%s206 + $0x20] sm:$0xff] %v364
      %398 = vst [vmem:[%s206 + $0x28] sm:$0xff] %v366
      %399 = vst [vmem:[%s206 + $0x30] sm:$0xff] %v369
      %400 = vst [vmem:[%s206 + $0x38] sm:$0xff] %v371
      %401 = vst [vmem:[%s206 + $0x40] sm:$0xff] %v374
      %402 = vst [vmem:[%s206 + $0x48] sm:$0xff] %v376
      %403 = vst [vmem:[%s206 + $0x50] sm:$0xff] %v379
      %404 = vst [vmem:[%s206 + $0x58] sm:$0xff] %v381
      %405 = vst [vmem:[%s206 + $0x60] sm:$0xff] %v384
      %406 = vst [vmem:[%s206 + $0x68] sm:$0xff] %v386
      %407 = vst [vmem:[%s206 + $0x70] sm:$0xff] %v389
      %408 = vst [vmem:[%s206 + $0x78] sm:$0xff] %v391
      %s409 = smul.u32 %s16, 128
      %v410 = vlaneseq
      %v411 = vshrl.u32 %v410, 7
      %v412 = vadd.s32 %v411, 8
      %v413 = vadd.s32 %v411, 16
      %v414 = vadd.s32 %v411, 24
      %v415 = vadd.s32 %v411, 32
      %v416 = vadd.s32 %v411, 40
      %v417 = vadd.s32 %v411, 48
      %v418 = vadd.s32 %v411, 56
      %v419 = vadd.s32 %v411, 64
      %v420 = vadd.s32 %v411, 72
      %v421 = vadd.s32 %v411, 80
      %v422 = vadd.s32 %v411, 88
      %v423 = vadd.s32 %v411, 96
      %v424 = vadd.s32 %v411, 104
      %v425 = vadd.s32 %v411, 112
      %v426 = vadd.s32 %v411, 120
      %v427 = vstv %s409
      %v428 = vadd.s32 %v427, %v411
      %v429 = vadd.s32 %v427, %v412
      %v430 = vadd.s32 %v427, %v413
      %v431 = vadd.s32 %v427, %v414
      %v432 = vadd.s32 %v427, %v415
      %v433 = vadd.s32 %v427, %v416
      %v434 = vadd.s32 %v427, %v417
      %v435 = vadd.s32 %v427, %v418
      %v436 = vadd.s32 %v427, %v419
      %v437 = vadd.s32 %v427, %v420
      %v438 = vadd.s32 %v427, %v421
      %v439 = vadd.s32 %v427, %v422
      %v440 = vadd.s32 %v427, %v423
      %v441 = vadd.s32 %v427, %v424
      %v442 = vadd.s32 %v427, %v425
      %v443 = vadd.s32 %v427, %v426
      %vm444 = vcmp.lt.s32.totalorder %v428, 512
      %vm445 = vcmp.lt.s32.totalorder %v429, 512
      %vm446 = vcmp.lt.s32.totalorder %v430, 512
      %vm447 = vcmp.lt.s32.totalorder %v431, 512
      %vm448 = vcmp.lt.s32.totalorder %v432, 512
      %vm449 = vcmp.lt.s32.totalorder %v433, 512
      %vm450 = vcmp.lt.s32.totalorder %v434, 512
      %vm451 = vcmp.lt.s32.totalorder %v435, 512
      %vm452 = vcmp.lt.s32.totalorder %v436, 512
      %vm453 = vcmp.lt.s32.totalorder %v437, 512
      %vm454 = vcmp.lt.s32.totalorder %v438, 512
      %vm455 = vcmp.lt.s32.totalorder %v439, 512
      %vm456 = vcmp.lt.s32.totalorder %v440, 512
      %vm457 = vcmp.lt.s32.totalorder %v441, 512
      %vm458 = vcmp.lt.s32.totalorder %v442, 512
      %vm459 = vcmp.lt.s32.totalorder %v443, 512
      %v460 = vsel %vm444, 1, 0
      %v461 = vsel %vm445, 1, 0
      %v462 = vsel %vm446, 1, 0
      %v463 = vsel %vm447, 1, 0
      %v464 = vsel %vm448, 1, 0
      %v465 = vsel %vm449, 1, 0
      %v466 = vsel %vm450, 1, 0
      %v467 = vsel %vm451, 1, 0
      %v468 = vsel %vm452, 1, 0
      %v469 = vsel %vm453, 1, 0
      %v470 = vsel %vm454, 1, 0
      %v471 = vsel %vm455, 1, 0
      %v472 = vsel %vm456, 1, 0
      %v473 = vsel %vm457, 1, 0
      %v474 = vsel %vm458, 1, 0
      %v475 = vsel %vm459, 1, 0
      %vm476 = vcmp.eq.s32.totalorder %v460, 1
      %vm477 = vcmp.eq.s32.totalorder %v461, 1
      %vm478 = vcmp.eq.s32.totalorder %v462, 1
      %vm479 = vcmp.eq.s32.totalorder %v463, 1
      %vm480 = vcmp.eq.s32.totalorder %v464, 1
      %vm481 = vcmp.eq.s32.totalorder %v465, 1
      %vm482 = vcmp.eq.s32.totalorder %v466, 1
      %vm483 = vcmp.eq.s32.totalorder %v467, 1
      %vm484 = vcmp.eq.s32.totalorder %v468, 1
      %vm485 = vcmp.eq.s32.totalorder %v469, 1
      %vm486 = vcmp.eq.s32.totalorder %v470, 1
      %vm487 = vcmp.eq.s32.totalorder %v471, 1
      %vm488 = vcmp.eq.s32.totalorder %v472, 1
      %vm489 = vcmp.eq.s32.totalorder %v473, 1
      %vm490 = vcmp.eq.s32.totalorder %v474, 1
      %vm491 = vcmp.eq.s32.totalorder %v475, 1
      %v492 = vsel %vm476, %v354, 0.0
      %v493 = vsel %vm477, %v356, 0.0
      %v494 = vsel %vm478, %v359, 0.0
      %v495 = vsel %vm479, %v361, 0.0
      %v496 = vsel %vm480, %v364, 0.0
      %v497 = vsel %vm481, %v366, 0.0
      %v498 = vsel %vm482, %v369, 0.0
      %v499 = vsel %vm483, %v371, 0.0
      %v500 = vsel %vm484, %v374, 0.0
      %v501 = vsel %vm485, %v376, 0.0
      %v502 = vsel %vm486, %v379, 0.0
      %v503 = vsel %vm487, %v381, 0.0
      %v504 = vsel %vm488, %v384, 0.0
      %v505 = vsel %vm489, %v386, 0.0
      %v506 = vsel %vm490, %v389, 0.0
      %v507 = vsel %vm491, %v391, 0.0
      %v508 = vadd.f32 %v492, %v493
      %v509 = vadd.f32 %v508, %v494
      %v510 = vadd.f32 %v509, %v495
      %v511 = vadd.f32 %v510, %v496
      %v512 = vadd.f32 %v511, %v497
      %v513 = vadd.f32 %v512, %v498
      %v514 = vadd.f32 %v513, %v499
      %v515 = vadd.f32 %v514, %v500
      %v516 = vadd.f32 %v515, %v501
      %v517 = vadd.f32 %v516, %v502
      %v518 = vadd.f32 %v517, %v503
      %v519 = vadd.f32 %v518, %v504
      %v520 = vadd.f32 %v519, %v505
      %v521 = vadd.f32 %v520, %v506
      %v522 = vadd.f32 %v521, %v507
      %v523 = vrot.slane %v522, 4
      %v524 = vadd.f32 %v522, %v523
      %v525 = vrot.slane %v524, 2
      %v526 = vadd.f32 %v524, %v525
      %v527 = vrot.slane %v526, 1
      %v528 = vadd.f32 %v526, %v527
      %v529 = vmul.f32 %v492, %v492
      %v530 = vmul.f32 %v493, %v493
      %v531 = vmul.f32 %v494, %v494
      %v532 = vmul.f32 %v495, %v495
      %v533 = vmul.f32 %v496, %v496
      %v534 = vmul.f32 %v497, %v497
      %v535 = vmul.f32 %v498, %v498
      %v536 = vmul.f32 %v499, %v499
      %v537 = vmul.f32 %v500, %v500
      %v538 = vmul.f32 %v501, %v501
      %v539 = vmul.f32 %v502, %v502
      %v540 = vmul.f32 %v503, %v503
      %v541 = vmul.f32 %v504, %v504
      %v542 = vmul.f32 %v505, %v505
      %v543 = vmul.f32 %v506, %v506
      %v544 = vmul.f32 %v507, %v507
      %v545 = vadd.f32 %v529, %v530
      %v546 = vadd.f32 %v545, %v531
      %v547 = vadd.f32 %v546, %v532
      %v548 = vadd.f32 %v547, %v533
      %v549 = vadd.f32 %v548, %v534
      %v550 = vadd.f32 %v549, %v535
      %v551 = vadd.f32 %v550, %v536
      %v552 = vadd.f32 %v551, %v537
      %v553 = vadd.f32 %v552, %v538
      %v554 = vadd.f32 %v553, %v539
      %v555 = vadd.f32 %v554, %v540
      %v556 = vadd.f32 %v555, %v541
      %v557 = vadd.f32 %v556, %v542
      %v558 = vadd.f32 %v557, %v543
      %v559 = vadd.f32 %v558, %v544
      %v560 = vrot.slane %v559, 4
      %v561 = vadd.f32 %v559, %v560
      %v562 = vrot.slane %v561, 2
      %v563 = vadd.f32 %v561, %v562
      %v564 = vrot.slane %v563, 1
      %v565 = vadd.f32 %v563, %v564
      %vm566 = vcmask 1040384
      %v567 = vsel %vm566, %v528, %v565
      %vm568 = vcmask 1041408
      %v569 = vsel %vm568, %v567, 0.0
      %570 = vst [vmem:[%s211] sm:$0xff] %v569
      %s571 = smul.u32 16, %s16
      %p572 = scmp.lt.s32.totalorder %s571, 63
      %s573 = scalar_select %p572, %s571, 63
      %s574 = smul.addr %s573, 8
      %s575 = scalar_lea.vmem %s3, %s574
      %p576 = scmp.lt.s32.totalorder %s16, 3
      %s577 = scalar_select %p576, %s16, 3
      %s578 = smul.addr %s577, 8
      %s579 = scalar_lea.vmem %s4, %s578
      // Predicated region
      $region33: #{conv2d_bn_forward.2} parent=31 // pred_check
        %p580 = pneg %p102
      $region34: #{conv2d_bn_forward.2} parent=31 // pred_check_branch
        %582 = sbr.rel (%p580) target = $region36
      $region35: #{conv2d_bn_forward.2} parent=31 // pred_region
        %s583 = smul.u32 16, %s16
      $region36: #{conv2d_bn_forward.2} parent=31 // pred_fallthru
        _
      // Predicated region
      $region37: #{conv2d_bn_forward.2} parent=31 // pred_check
        %p584 = pneg %p128
      $region38: #{conv2d_bn_forward.2} parent=31 // pred_check_branch
        %586 = sbr.rel (%p584) target = $region40
      $region39: #{conv2d_bn_forward.2} parent=31 // pred_region
        _
      $region40: #{conv2d_bn_forward.2} parent=31 // pred_fallthru
        _
    $region32: #{conv2d_bn_forward.2} parent=5 // pred_fallthru
      _
    %p587 = scmp.le.s32.totalorder 2, %s11
    // Predicated region
    $region41: #{conv2d_bn_forward.2} parent=5 // pred_check
      %p588 = pneg %p587
    $region42: #{conv2d_bn_forward.2} parent=5 // pred_check_branch
      %590 = sbr.rel (%p588) target = $region44
    $region43: #{conv2d_bn_forward.2} parent=5 // pred_region
      %s591 = ssub.s32 %s11, 2
      // Predicated region
      $region45: #{conv2d_bn_forward.2} parent=43 // pred_check
        %p592 = pneg %p108
      $region46: #{conv2d_bn_forward.2} parent=43 // pred_check_branch
        %594 = sbr.rel (%p592) target = $region48
      $region47: #{conv2d_bn_forward.2} parent=43 // pred_region
        %s595 = smul.u32 16, %s17
        %p596 = scmp.lt.s32.totalorder %s595, 63
        %s597 = scalar_select %p596, %s595, 63
        %s598 = smul.addr %s597, 8
        %s599 = scalar_lea.vmem %s3, %s598
      $region48: #{conv2d_bn_forward.2} parent=43 // pred_fallthru
        _
      // Predicated region
      $region49: #{conv2d_bn_forward.2} parent=43 // pred_check
        %p600 = pneg %p134
      $region50: #{conv2d_bn_forward.2} parent=43 // pred_check_branch
        %602 = sbr.rel (%p600) target = $region52
      $region51: #{conv2d_bn_forward.2} parent=43 // pred_region
        %p603 = scmp.lt.s32.totalorder %s17, 3
        %s604 = scalar_select %p603, %s17, 3
        %s605 = smul.addr %s604, 8
        %s606 = scalar_lea.vmem %s4, %s605
      $region52: #{conv2d_bn_forward.2} parent=43 // pred_fallthru
        _
    $region44: #{conv2d_bn_forward.2} parent=5 // pred_fallthru
      _
  $region6: #{conv2d_bn_forward.2} parent=0 // loop_footer
    %s15 = sadd.s32 1, %s11
  $region7: #{conv2d_bn_forward.2} parent=0 // loop_footer_branch
    %10 = sbr.rel target = $region3
  $region8: #{conv2d_bn_forward.2} parent=0 // loop_exit
    _

</llo_original>
